<compile_context>
chip_gen: v5e
topology: v5e:2x2
jax: 0.10.0
libtpu: 0.0.40
codegen_flags: <defaults>
</compile_context>

<pallas_src>
import jax
import jax.numpy as jnp
from jax.experimental import pallas as pl
from jax.experimental.pallas import tpu as pltpu

_LANES = 128


def planar_flows_kernel(params_ref, z_ref, z_out_ref, ld_ref):
    """Apply K planar flows to one batch tile.

    params_ref : SMEM (5*K,) f32, per flow [u0, u1, w0, w1, b]  (scalar prefetch)
    z_ref      : VMEM (2, R, 128) f32   plane 0 = z[:, 0], plane 1 = z[:, 1]
    z_out_ref  : VMEM (2, R, 128) f32
    ld_ref     : VMEM (R, 128)    f32   sum_k log|det J_k| per batch element
    """
    num_flows = params_ref.shape[0] // 5

    # Two (R, 128) sublane+lane dense slabs carried live through the whole stack.
    z0 = z_ref[0, :, :]
    z1 = z_ref[1, :, :]
    det_prod = jnp.ones_like(z0)  # running product of |det J_k|

    # K is a small static constant -> unrolled Python loop over scalar SMEM reads.
    # TODO(synk): for K in the tens/hundreds switch to lax.fori_loop with dynamic
    # SMEM reads and accumulate log per flow (or renormalize every ~16 flows) to
    # avoid f32 under/overflow of the running product.
    for k in range(num_flows):
        u0 = params_ref[5 * k + 0]
        u1 = params_ref[5 * k + 1]
        w0 = params_ref[5 * k + 2]
        w1 = params_ref[5 * k + 3]
        bk = params_ref[5 * k + 4]
        wtu = w0 * u0 + w1 * u1          # scalar path
        one_plus_wtu = 1.0 + wtu         # scalar path

        t = jnp.tanh(z0 * w0 + z1 * w1 + bk)   # (R, 128), tanh on the EUP

        # z <- z + u * tanh(w.z + b)
        z0 = z0 + u0 * t
        z1 = z1 + u1 * t

        # |det J| = |1 + (1 - t^2) * (w.u)| = |(1 + w.u) - (w.u) * t^2|
        det_prod = det_prod * jnp.abs(one_plus_wtu - wtu * (t * t))

    z_out_ref[0, :, :] = z0
    z_out_ref[1, :, :] = z1
    ld_ref[...] = jnp.log(det_prod)      # single log per element instead of K


def planar_flow_stack(z2b, u, w, b, *, tile_rows=32):
    """Fast path. z2b: (2, B) coordinate-major latents; u, w: (K, 2); b: (K,).

    Returns (z_K as (2, B), log_det_sum as (B,)).

    tile_rows: sublane rows per grid step (multiple of 8); each step covers
    tile_rows*128 batch elements.  Per-step VMEM is tens of KiB, so VMEM never
    constrains the tile on v5e/v6e/v7x.  For very large batches on v7x keep the
    grid at >=2 steps so the "parallel" axis shards across both TensorCores.
    """
    dim, batch = z2b.shape
    assert dim == 2, "planar-flow model is defined over 2-D latents"

    tile_rows = max(8, (int(tile_rows) // 8) * 8)
    rows = pl.cdiv(batch, _LANES)
    rows = pl.cdiv(rows, 8) * 8                 # sublane-align
    tile_rows = min(tile_rows, rows)
    rows = pl.cdiv(rows, tile_rows) * tile_rows # whole number of grid steps
    padded = rows * _LANES

    zf = z2b.astype(jnp.float32)
    if padded != batch:
        zf = jnp.pad(zf, ((0, 0), (0, padded - batch)))
    z3 = zf.reshape(2, rows, _LANES)            # free reshape, no relayout

    # Flat per-flow parameter record [u0, u1, w0, w1, b], scalar-prefetched to SMEM.
    params = jnp.stack(
        [u[:, 0], u[:, 1], w[:, 0], w[:, 1], b], axis=1
    ).reshape(-1).astype(jnp.float32)

    z_out, ld = pl.pallas_call(
        planar_flows_kernel,
        out_shape=(
            jax.ShapeDtypeStruct((2, rows, _LANES), jnp.float32),
            jax.ShapeDtypeStruct((rows, _LANES), jnp.float32),
        ),
        grid_spec=pltpu.PrefetchScalarGridSpec(
            num_scalar_prefetch=1,
            grid=(rows // tile_rows,),
            in_specs=[
                pl.BlockSpec((2, tile_rows, _LANES), lambda i, p: (0, i, 0)),
            ],
            out_specs=(
                pl.BlockSpec((2, tile_rows, _LANES), lambda i, p: (0, i, 0)),
                pl.BlockSpec((tile_rows, _LANES), lambda i, p: (i, 0)),
            ),
        ),
        compiler_params=pltpu.CompilerParams(
            dimension_semantics=("parallel",)),   # shards batch steps across TCs on v7x
    )(params, z3)

    z_out2 = z_out.reshape(2, padded)[:, :batch]
    log_det = ld.reshape(padded)[:batch]
    return z_out2, log_det


def normalizing_flow_forward(z, u, w, b, *, tile_rows=32):
    """Drop-in equivalent of NormalizingFlowModel.forward for z of shape (B, 2).

    TODO(synk): the surrounding model should keep the (2, B) coordinate-major
    layout end-to-end (use planar_flow_stack directly); the transposes here are
    materialized HBM relayouts that can cost as much as the kernel for large B.
    """
    z_out2, log_det = planar_flow_stack(jnp.transpose(z), u, w, b, tile_rows=tile_rows)
    return jnp.transpose(z_out2), log_det


def reference_forward(z, u, w, b):
    """Pure-JAX reference mirroring the PyTorch forward (loop over planar flows).

    Elementwise math only (no matmul/dot), so TPU matmul precision cannot skew it.
    """
    log_det_sum = jnp.zeros((z.shape[0],), jnp.float32)
    for k in range(u.shape[0]):
        act = z[:, 0] * w[k, 0] + z[:, 1] * w[k, 1] + b[k]
        t = jnp.tanh(act)
        z = z + u[k][None, :] * t[:, None]
        wtu = w[k, 0] * u[k, 0] + w[k, 1] * u[k, 1]
        log_det_sum = log_det_sum + jnp.log(jnp.abs(1.0 + (1.0 - t * t) * wtu))
    return z, log_det_sum


if __name__ == "__main__":
    key = jax.random.PRNGKey(0)
    k_z, k_u, k_w, k_b = jax.random.split(key, 4)

    batch, dim, num_flows = 512, 2, 4

    # Base-distribution sample drawn directly in the (2, B) coordinate-major
    # layout used end-to-end by the fast path (standard normal is layout-free).
    z0_2b = jax.random.normal(k_z, (dim, batch), dtype=jnp.float32)

    u_raw = 0.5 * jax.random.normal(k_u, (num_flows, dim), dtype=jnp.float32)
    w = 0.5 * jax.random.normal(k_w, (num_flows, dim), dtype=jnp.float32)
    b = 0.1 * jax.random.normal(k_b, (num_flows,), dtype=jnp.float32)

    # Standard planar-flow invertibility reparametrization: guarantees w.u > -1,
    # so |1 + (1 - tanh^2) * (w.u)| stays bounded away from zero.
    wtu = jnp.sum(w * u_raw, axis=1, keepdims=True)
    u = u_raw + (-1.0 + jax.nn.softplus(wtu) - wtu) * w / (
        jnp.sum(w * w, axis=1, keepdims=True) + 1e-8)

    # Fast path: (2, B) layout end-to-end, no relayout around the kernel.
    z_out2, log_det = planar_flow_stack(z0_2b, u, w, b)
    jax.block_until_ready((z_out2, log_det))

    # Pure-JAX reference (batch-major, like the PyTorch module).
    z_bm = jnp.transpose(z0_2b)
    z_ref, ld_ref = reference_forward(z_bm, u, w, b)
    assert jnp.allclose(jnp.transpose(z_out2), z_ref, rtol=1e-4, atol=1e-4), "z mismatch"
    assert jnp.allclose(log_det, ld_ref, rtol=1e-4, atol=1e-4), "log_det mismatch"

    # Drop-in (B, 2) module-equivalent wrapper.
    z_out_bm, ld_bm = normalizing_flow_forward(z_bm, u, w, b)
    jax.block_until_ready((z_out_bm, ld_bm))
    assert jnp.allclose(z_out_bm, z_ref, rtol=1e-4, atol=1e-4), "z mismatch (batch-major)"
    assert jnp.allclose(ld_bm, ld_ref, rtol=1e-4, atol=1e-4), "log_det mismatch (batch-major)"

    print("KERNEL_OK")
</pallas_src>

<mosaic_0001>
module attributes {stable_mosaic.version = 11 : i64} {
  func.func @planar_flows_kernel(%arg0: i32, %arg1: memref<20xf32, #tpu.memory_space<smem>>, %arg2: memref<2x8x128xf32, #tpu.memory_space<vmem>>, %arg3: memref<2x8x128xf32, #tpu.memory_space<vmem>>, %arg4: memref<8x128xf32, #tpu.memory_space<vmem>>) attributes {dimension_semantics = [#tpu.dimension_semantics<parallel>], iteration_bounds = array<i64: 1>, scalar_prefetch = 1 : i64, scratch_operands = 0 : i64, tpu.core_type = #tpu.core_type<tc>, window_params = [{transform_indices = @transform_0, window_bounds = array<i64: 2, 8, 128>}, {transform_indices = @transform_1, window_bounds = array<i64: 2, 8, 128>}, {transform_indices = @transform_2, window_bounds = array<i64: 8, 128>}]} {
    %c0 = arith.constant 0 : index
    %c0_0 = arith.constant 0 : index
    %c0_1 = arith.constant 0 : index
    %0 = vector.load %arg2[%c0, %c0_0, %c0_1] : memref<2x8x128xf32, #tpu.memory_space<vmem>>, vector<1x8x128xf32>
    %1 = vector.shape_cast %0 : vector<1x8x128xf32> to vector<8x128xf32>
    %c1 = arith.constant 1 : index
    %c0_2 = arith.constant 0 : index
    %c0_3 = arith.constant 0 : index
    %2 = vector.load %arg2[%c1, %c0_2, %c0_3] : memref<2x8x128xf32, #tpu.memory_space<vmem>>, vector<1x8x128xf32>
    %3 = vector.shape_cast %2 : vector<1x8x128xf32> to vector<8x128xf32>
    %cst = arith.constant 1.000000e+00 : f32
    %4 = vector.broadcast %cst : f32 to vector<8x128xf32>
    %c0_4 = arith.constant 0 : index
    %5 = memref.load %arg1[%c0_4] : memref<20xf32, #tpu.memory_space<smem>>
    %c1_5 = arith.constant 1 : index
    %6 = memref.load %arg1[%c1_5] : memref<20xf32, #tpu.memory_space<smem>>
    %c2 = arith.constant 2 : index
    %7 = memref.load %arg1[%c2] : memref<20xf32, #tpu.memory_space<smem>>
    %c3 = arith.constant 3 : index
    %8 = memref.load %arg1[%c3] : memref<20xf32, #tpu.memory_space<smem>>
    %c4 = arith.constant 4 : index
    %9 = memref.load %arg1[%c4] : memref<20xf32, #tpu.memory_space<smem>>
    %10 = arith.mulf %7, %5 : f32
    %11 = arith.mulf %8, %6 : f32
    %12 = arith.addf %10, %11 : f32
    %cst_6 = arith.constant 1.000000e+00 : f32
    %13 = arith.addf %cst_6, %12 : f32
    %14 = vector.broadcast %7 : f32 to vector<8x128xf32>
    %15 = arith.mulf %1, %14 : vector<8x128xf32>
    %16 = vector.broadcast %8 : f32 to vector<8x128xf32>
    %17 = arith.mulf %3, %16 : vector<8x128xf32>
    %18 = arith.addf %15, %17 : vector<8x128xf32>
    %19 = vector.broadcast %9 : f32 to vector<8x128xf32>
    %20 = arith.addf %18, %19 : vector<8x128xf32>
    %21 = math.tanh %20 : vector<8x128xf32>
    %22 = vector.broadcast %5 : f32 to vector<8x128xf32>
    %23 = arith.mulf %22, %21 : vector<8x128xf32>
    %24 = arith.addf %1, %23 : vector<8x128xf32>
    %25 = vector.broadcast %6 : f32 to vector<8x128xf32>
    %26 = arith.mulf %25, %21 : vector<8x128xf32>
    %27 = arith.addf %3, %26 : vector<8x128xf32>
    %28 = arith.mulf %21, %21 : vector<8x128xf32>
    %29 = vector.broadcast %12 : f32 to vector<8x128xf32>
    %30 = arith.mulf %29, %28 : vector<8x128xf32>
    %31 = vector.broadcast %13 : f32 to vector<8x128xf32>
    %32 = arith.subf %31, %30 : vector<8x128xf32>
    %33 = math.absf %32 : vector<8x128xf32>
    %34 = arith.mulf %4, %33 : vector<8x128xf32>
    %c5 = arith.constant 5 : index
    %35 = memref.load %arg1[%c5] : memref<20xf32, #tpu.memory_space<smem>>
    %c6 = arith.constant 6 : index
    %36 = memref.load %arg1[%c6] : memref<20xf32, #tpu.memory_space<smem>>
    %c7 = arith.constant 7 : index
    %37 = memref.load %arg1[%c7] : memref<20xf32, #tpu.memory_space<smem>>
    %c8 = arith.constant 8 : index
    %38 = memref.load %arg1[%c8] : memref<20xf32, #tpu.memory_space<smem>>
    %c9 = arith.constant 9 : index
    %39 = memref.load %arg1[%c9] : memref<20xf32, #tpu.memory_space<smem>>
    %40 = arith.mulf %37, %35 : f32
    %41 = arith.mulf %38, %36 : f32
    %42 = arith.addf %40, %41 : f32
    %cst_7 = arith.constant 1.000000e+00 : f32
    %43 = arith.addf %cst_7, %42 : f32
    %44 = vector.broadcast %37 : f32 to vector<8x128xf32>
    %45 = arith.mulf %24, %44 : vector<8x128xf32>
    %46 = vector.broadcast %38 : f32 to vector<8x128xf32>
    %47 = arith.mulf %27, %46 : vector<8x128xf32>
    %48 = arith.addf %45, %47 : vector<8x128xf32>
    %49 = vector.broadcast %39 : f32 to vector<8x128xf32>
    %50 = arith.addf %48, %49 : vector<8x128xf32>
    %51 = math.tanh %50 : vector<8x128xf32>
    %52 = vector.broadcast %35 : f32 to vector<8x128xf32>
    %53 = arith.mulf %52, %51 : vector<8x128xf32>
    %54 = arith.addf %24, %53 : vector<8x128xf32>
    %55 = vector.broadcast %36 : f32 to vector<8x128xf32>
    %56 = arith.mulf %55, %51 : vector<8x128xf32>
    %57 = arith.addf %27, %56 : vector<8x128xf32>
    %58 = arith.mulf %51, %51 : vector<8x128xf32>
    %59 = vector.broadcast %42 : f32 to vector<8x128xf32>
    %60 = arith.mulf %59, %58 : vector<8x128xf32>
    %61 = vector.broadcast %43 : f32 to vector<8x128xf32>
    %62 = arith.subf %61, %60 : vector<8x128xf32>
    %63 = math.absf %62 : vector<8x128xf32>
    %64 = arith.mulf %34, %63 : vector<8x128xf32>
    %c10 = arith.constant 10 : index
    %65 = memref.load %arg1[%c10] : memref<20xf32, #tpu.memory_space<smem>>
    %c11 = arith.constant 11 : index
    %66 = memref.load %arg1[%c11] : memref<20xf32, #tpu.memory_space<smem>>
    %c12 = arith.constant 12 : index
    %67 = memref.load %arg1[%c12] : memref<20xf32, #tpu.memory_space<smem>>
    %c13 = arith.constant 13 : index
    %68 = memref.load %arg1[%c13] : memref<20xf32, #tpu.memory_space<smem>>
    %c14 = arith.constant 14 : index
    %69 = memref.load %arg1[%c14] : memref<20xf32, #tpu.memory_space<smem>>
    %70 = arith.mulf %67, %65 : f32
    %71 = arith.mulf %68, %66 : f32
    %72 = arith.addf %70, %71 : f32
    %cst_8 = arith.constant 1.000000e+00 : f32
    %73 = arith.addf %cst_8, %72 : f32
    %74 = vector.broadcast %67 : f32 to vector<8x128xf32>
    %75 = arith.mulf %54, %74 : vector<8x128xf32>
    %76 = vector.broadcast %68 : f32 to vector<8x128xf32>
    %77 = arith.mulf %57, %76 : vector<8x128xf32>
    %78 = arith.addf %75, %77 : vector<8x128xf32>
    %79 = vector.broadcast %69 : f32 to vector<8x128xf32>
    %80 = arith.addf %78, %79 : vector<8x128xf32>
    %81 = math.tanh %80 : vector<8x128xf32>
    %82 = vector.broadcast %65 : f32 to vector<8x128xf32>
    %83 = arith.mulf %82, %81 : vector<8x128xf32>
    %84 = arith.addf %54, %83 : vector<8x128xf32>
    %85 = vector.broadcast %66 : f32 to vector<8x128xf32>
    %86 = arith.mulf %85, %81 : vector<8x128xf32>
    %87 = arith.addf %57, %86 : vector<8x128xf32>
    %88 = arith.mulf %81, %81 : vector<8x128xf32>
    %89 = vector.broadcast %72 : f32 to vector<8x128xf32>
    %90 = arith.mulf %89, %88 : vector<8x128xf32>
    %91 = vector.broadcast %73 : f32 to vector<8x128xf32>
    %92 = arith.subf %91, %90 : vector<8x128xf32>
    %93 = math.absf %92 : vector<8x128xf32>
    %94 = arith.mulf %64, %93 : vector<8x128xf32>
    %c15 = arith.constant 15 : index
    %95 = memref.load %arg1[%c15] : memref<20xf32, #tpu.memory_space<smem>>
    %c16 = arith.constant 16 : index
    %96 = memref.load %arg1[%c16] : memref<20xf32, #tpu.memory_space<smem>>
    %c17 = arith.constant 17 : index
    %97 = memref.load %arg1[%c17] : memref<20xf32, #tpu.memory_space<smem>>
    %c18 = arith.constant 18 : index
    %98 = memref.load %arg1[%c18] : memref<20xf32, #tpu.memory_space<smem>>
    %c19 = arith.constant 19 : index
    %99 = memref.load %arg1[%c19] : memref<20xf32, #tpu.memory_space<smem>>
    %100 = arith.mulf %97, %95 : f32
    %101 = arith.mulf %98, %96 : f32
    %102 = arith.addf %100, %101 : f32
    %cst_9 = arith.constant 1.000000e+00 : f32
    %103 = arith.addf %cst_9, %102 : f32
    %104 = vector.broadcast %97 : f32 to vector<8x128xf32>
    %105 = arith.mulf %84, %104 : vector<8x128xf32>
    %106 = vector.broadcast %98 : f32 to vector<8x128xf32>
    %107 = arith.mulf %87, %106 : vector<8x128xf32>
    %108 = arith.addf %105, %107 : vector<8x128xf32>
    %109 = vector.broadcast %99 : f32 to vector<8x128xf32>
    %110 = arith.addf %108, %109 : vector<8x128xf32>
    %111 = math.tanh %110 : vector<8x128xf32>
    %112 = vector.broadcast %95 : f32 to vector<8x128xf32>
    %113 = arith.mulf %112, %111 : vector<8x128xf32>
    %114 = arith.addf %84, %113 : vector<8x128xf32>
    %115 = vector.broadcast %96 : f32 to vector<8x128xf32>
    %116 = arith.mulf %115, %111 : vector<8x128xf32>
    %117 = arith.addf %87, %116 : vector<8x128xf32>
    %118 = arith.mulf %111, %111 : vector<8x128xf32>
    %119 = vector.broadcast %102 : f32 to vector<8x128xf32>
    %120 = arith.mulf %119, %118 : vector<8x128xf32>
    %121 = vector.broadcast %103 : f32 to vector<8x128xf32>
    %122 = arith.subf %121, %120 : vector<8x128xf32>
    %123 = math.absf %122 : vector<8x128xf32>
    %124 = arith.mulf %94, %123 : vector<8x128xf32>
    %c0_10 = arith.constant 0 : index
    %c0_11 = arith.constant 0 : index
    %c0_12 = arith.constant 0 : index
    %125 = vector.load %arg3[%c0_10, %c0_11, %c0_12] : memref<2x8x128xf32, #tpu.memory_space<vmem>>, vector<1x8x128xf32>
    %126 = vector.shape_cast %125 : vector<1x8x128xf32> to vector<8x128xf32>
    %127 = vector.shape_cast %114 : vector<8x128xf32> to vector<1x8x128xf32>
    tpu.vector_store %arg3[%c0_10, %c0_11, %c0_12], %127 {strides = array<i32>} : memref<2x8x128xf32, #tpu.memory_space<vmem>>, vector<1x8x128xf32>,
    %c1_13 = arith.constant 1 : index
    %c0_14 = arith.constant 0 : index
    %c0_15 = arith.constant 0 : index
    %128 = vector.load %arg3[%c1_13, %c0_14, %c0_15] : memref<2x8x128xf32, #tpu.memory_space<vmem>>, vector<1x8x128xf32>
    %129 = vector.shape_cast %128 : vector<1x8x128xf32> to vector<8x128xf32>
    %130 = vector.shape_cast %117 : vector<8x128xf32> to vector<1x8x128xf32>
    tpu.vector_store %arg3[%c1_13, %c0_14, %c0_15], %130 {strides = array<i32>} : memref<2x8x128xf32, #tpu.memory_space<vmem>>, vector<1x8x128xf32>,
    %131 = math.log %124 : vector<8x128xf32>
    %c0_16 = arith.constant 0 : index
    %c0_17 = arith.constant 0 : index
    %132 = vector.load %arg4[%c0_16, %c0_17] : memref<8x128xf32, #tpu.memory_space<vmem>>, vector<8x128xf32>
    tpu.vector_store %arg4[%c0_16, %c0_17], %131 {strides = array<i32>} : memref<8x128xf32, #tpu.memory_space<vmem>>, vector<8x128xf32>,
    return
  }
  func.func @transform_0(%arg0: i32, %arg1: memref<20xf32, #tpu.memory_space<smem>>) -> (i32, i32, i32) {
    %c0_i32 = arith.constant 0 : i32
    %c0_i32_0 = arith.constant 0 : i32
    %c0_i32_1 = arith.constant 0 : i32
    return %c0_i32, %arg0, %c0_i32_0 : i32, i32, i32
  }
  func.func @transform_1(%arg0: i32, %arg1: memref<20xf32, #tpu.memory_space<smem>>) -> (i32, i32, i32) {
    %c0_i32 = arith.constant 0 : i32
    %c0_i32_0 = arith.constant 0 : i32
    %c0_i32_1 = arith.constant 0 : i32
    return %c0_i32, %arg0, %c0_i32_0 : i32, i32, i32
  }
  func.func @transform_2(%arg0: i32, %arg1: memref<20xf32, #tpu.memory_space<smem>>) -> (i32, i32) {
    %c0_i32 = arith.constant 0 : i32
    %c0_i32_0 = arith.constant 0 : i32
    return %arg0, %c0_i32 : i32, i32
  }
}

</mosaic_0001>

<llo_original>
// kernel: tpu_custom_call.1
$region0: #{tpu_custom_call.1}
  #allocation0 [shape = 'u32[]', space=smem, size = 0x4, offset = 0x4, fixed_abs, tag = 'smem constant byte address 0x4 - core index']
  #allocation1 [shape = 'u32[72,128]{1,0:T(1,128)}', space=vmem, size = 0x9000, scoped, tag = 'internal scratch']
  #allocation2 [shape = 's32[1]{0}', space=sflag, size = 0x4, scoped, tag = 'scoped memory for tpu_custom_call.1']
  #allocation3 [shape = 'u8[512]{0}', space=smem, size = 0x200, scoped, tag = 'prefetched SMEM operand 0']
  %s0 = inlined_call_operand.hbm [shape: f32[20], index: 0, kind: input, shape index: {}]
  %s1 = inlined_call_operand.hbm [shape: f32[2,8,128], index: 1, kind: input, shape index: {}]
  %s2 = inlined_call_operand.hbm [shape: f32[2,8,128], index: 2, kind: output, shape index: {0}]
  %s3 = inlined_call_operand.hbm [shape: f32[8,128], index: 3, kind: output, shape index: {1}]
  %4 = xla_tuple %s2, %s3
  %s5 = sld [smem:[#allocation0]]
  $region26: #{tpu_custom_call.1} parent=0
    _
  %s7 = ssub.s32 1, %s5
  %s8 = scalar_select 0, %s7, %s5
  %s10 = sshll.u32 %s0, 4
  %s11 = int_to_ptr.hbm [resolvable:$true] %s10
  %13 = dma.hbm_to_smem %s11, 16, [#allocation3], [#allocation2]
  %15 = dma.done [#allocation2], 16
  %16 = sfence
  $region1: #{tpu_custom_call.1} parent=0
    #allocation4 [shape = 'u8[8192]{0}', space=vmem, size = 0x2000, scoped, tag = 'input window, operand 1, single buffered']
    #allocation5 [shape = 's32[1]{0}', space=sflag, size = 0x4, scoped, tag = 'scoped memory for tpu_custom_call.1']
    #allocation6 [shape = 's32[1]{0}', space=sflag, size = 0x4, scoped, tag = 'scoped memory for tpu_custom_call.1']
    #allocation7 [shape = 'u8[8192]{0}', space=vmem, size = 0x2000, scoped, tag = 'output window, operand 0, single buffered']
    #allocation8 [shape = 'u8[4096]{0}', space=vmem, size = 0x1000, scoped, tag = 'output window, operand 1, single buffered']
    #allocation9 [shape = 's32[1]{0}', space=sflag, size = 0x4, scoped, tag = 'scoped memory for tpu_custom_call.1']
    %17 = vsyncpa [#allocation5], 0
    %18 = vsyncpa [#allocation6], 0
    %19 = vsyncpa [#allocation9], 0
    // Predicated region
    $region2: #{tpu_custom_call.1} parent=1 // pred_check
      _
    $region3: #{tpu_custom_call.1} parent=1 // pred_check_branch
      %21 = sbr.rel (0) target = $region5
    $region4: #{tpu_custom_call.1} parent=1 // pred_region
      %23 = vsyncadd [#allocation5], 0
      %s24 = sshll.u32 %s1, 4
      %s25 = int_to_ptr.hbm [resolvable:$true] %s24
      %s26 = sshll.u32 [#allocation4], 4
      %s27 = int_to_ptr.vmem [resolvable:$true] %s26
      %32 = dma.hbm_to_vmem [thread:$0]  %s25, 256, %s27, [#allocation5], 128, 128, 8
    $region5: #{tpu_custom_call.1} parent=1 // pred_fallthru
      _
    // Predicated region
    $region6: #{tpu_custom_call.1} parent=1 // pred_check
      _
    $region7: #{tpu_custom_call.1} parent=1 // pred_check_branch
      %34 = sbr.rel (0) target = $region9
    $region8: #{tpu_custom_call.1} parent=1 // pred_region
      %36 = dma.done [#allocation5], 256
    $region9: #{tpu_custom_call.1} parent=1 // pred_fallthru
      _
    %v37 = vld [vmem:[#allocation4] sm:$0xff]
    %s38 = scalar_lea.vmem [#allocation4], 8
    %v39 = vld [vmem:[%s38] sm:$0xff]
    %s40 = sld [smem:[#allocation3]]
    %s41 = sld [smem:[#allocation3 + $0x1]]
    %s42 = sld [smem:[#allocation3 + $0x2]]
    %s43 = sld [smem:[#allocation3 + $0x3]]
    %s44 = sld [smem:[#allocation3 + $0x4]]
    %s45 = smul.f32 %s42, %s40
    %s46 = smul.f32 %s43, %s41
    %s47 = sadd.f32 %s45, %s46
    %s48 = sadd.f32 %s47, 1.0
    %v49 = vstv %s42
    %v50 = vmul.f32 %v37, %v49
    %v51 = vstv %s43
    %v52 = vmul.f32 %v39, %v51
    %v53 = vadd.f32 %v50, %v52
    %v54 = vstv %s44
    %v55 = vadd.f32 %v53, %v54
    %v56 = vtanh.pop %v55
    %v57 = vstv %s40
    %v58 = vmul.f32 %v57, %v56
    %v59 = vadd.f32 %v37, %v58
    %v60 = vstv %s41
    %v61 = vmul.f32 %v60, %v56
    %v62 = vadd.f32 %v39, %v61
    %v63 = vmul.f32 %v56, %v56
    %v64 = vstv %s47
    %v65 = vmul.f32 %v64, %v63
    %v66 = vstv %s48
    %v67 = vsub.f32 %v66, %v65
    %v68 = vand.u32 2147483647, %v67
    %s69 = sld [smem:[#allocation3 + $0x5]]
    %s70 = sld [smem:[#allocation3 + $0x6]]
    %s71 = sld [smem:[#allocation3 + $0x7]]
    %s72 = sld [smem:[#allocation3 + $0x8]]
    %s73 = sld [smem:[#allocation3 + $0x9]]
    %s74 = smul.f32 %s71, %s69
    %s75 = smul.f32 %s72, %s70
    %s76 = sadd.f32 %s74, %s75
    %s77 = sadd.f32 %s76, 1.0
    %v78 = vstv %s71
    %v79 = vmul.f32 %v59, %v78
    %v80 = vstv %s72
    %v81 = vmul.f32 %v62, %v80
    %v82 = vadd.f32 %v79, %v81
    %v83 = vstv %s73
    %v84 = vadd.f32 %v82, %v83
    %v85 = vtanh.pop %v84
    %v86 = vstv %s69
    %v87 = vmul.f32 %v86, %v85
    %v88 = vadd.f32 %v59, %v87
    %v89 = vstv %s70
    %v90 = vmul.f32 %v89, %v85
    %v91 = vadd.f32 %v62, %v90
    %v92 = vmul.f32 %v85, %v85
    %v93 = vstv %s76
    %v94 = vmul.f32 %v93, %v92
    %v95 = vstv %s77
    %v96 = vsub.f32 %v95, %v94
    %v97 = vand.u32 2147483647, %v96
    %v98 = vmul.f32 %v68, %v97
    %s99 = sld [smem:[#allocation3 + $0xa]]
    %s100 = sld [smem:[#allocation3 + $0xb]]
    %s101 = sld [smem:[#allocation3 + $0xc]]
    %s102 = sld [smem:[#allocation3 + $0xd]]
    %s103 = sld [smem:[#allocation3 + $0xe]]
    %s104 = smul.f32 %s101, %s99
    %s105 = smul.f32 %s102, %s100
    %s106 = sadd.f32 %s104, %s105
    %s107 = sadd.f32 %s106, 1.0
    %v108 = vstv %s101
    %v109 = vmul.f32 %v88, %v108
    %v110 = vstv %s102
    %v111 = vmul.f32 %v91, %v110
    %v112 = vadd.f32 %v109, %v111
    %v113 = vstv %s103
    %v114 = vadd.f32 %v112, %v113
    %v115 = vtanh.pop %v114
    %v116 = vstv %s99
    %v117 = vmul.f32 %v116, %v115
    %v118 = vadd.f32 %v88, %v117
    %v119 = vstv %s100
    %v120 = vmul.f32 %v119, %v115
    %v121 = vadd.f32 %v91, %v120
    %v122 = vmul.f32 %v115, %v115
    %v123 = vstv %s106
    %v124 = vmul.f32 %v123, %v122
    %v125 = vstv %s107
    %v126 = vsub.f32 %v125, %v124
    %v127 = vand.u32 2147483647, %v126
    %v128 = vmul.f32 %v98, %v127
    %s129 = sld [smem:[#allocation3 + $0xf]]
    %s130 = sld [smem:[#allocation3 + $0x10]]
    %s131 = sld [smem:[#allocation3 + $0x11]]
    %s132 = sld [smem:[#allocation3 + $0x12]]
    %s133 = sld [smem:[#allocation3 + $0x13]]
    %s134 = smul.f32 %s131, %s129
    %s135 = smul.f32 %s132, %s130
    %s136 = sadd.f32 %s134, %s135
    %s137 = sadd.f32 %s136, 1.0
    %v138 = vstv %s131
    %v139 = vmul.f32 %v118, %v138
    %v140 = vstv %s132
    %v141 = vmul.f32 %v121, %v140
    %v142 = vadd.f32 %v139, %v141
    %v143 = vstv %s133
    %v144 = vadd.f32 %v142, %v143
    %v145 = vtanh.pop %v144
    %v146 = vstv %s129
    %v147 = vmul.f32 %v146, %v145
    %v148 = vadd.f32 %v118, %v147
    %v149 = vstv %s130
    %v150 = vmul.f32 %v149, %v145
    %v151 = vadd.f32 %v121, %v150
    %v152 = vmul.f32 %v145, %v145
    %v153 = vstv %s136
    %v154 = vmul.f32 %v153, %v152
    %v155 = vstv %s137
    %v156 = vsub.f32 %v155, %v154
    %v157 = vand.u32 2147483647, %v156
    %v158 = vmul.f32 %v128, %v157
    %159 = vst [vmem:[#allocation7] sm:$0xff] %v148
    %s160 = scalar_lea.vmem [#allocation7], 8
    %161 = vst [vmem:[%s160] sm:$0xff] %v151
    %v162 = vlog2.pop %v158
    %v163 = vmul.f32 %v162, 0.6931472
    %164 = vst [vmem:[#allocation8] sm:$0xff] %v163
    // Predicated region
    $region10: #{tpu_custom_call.1} parent=1 // pred_check
      _
    $region11: #{tpu_custom_call.1} parent=1 // pred_check_branch
      %166 = sbr.rel (0) target = $region13
    $region12: #{tpu_custom_call.1} parent=1 // pred_region
      %168 = vsyncadd [#allocation6], 0
      %s169 = sshll.u32 [#allocation7], 4
      %s170 = int_to_ptr.vmem [resolvable:$true] %s169
      %s171 = sshll.u32 %s2, 4
      %s172 = int_to_ptr.hbm [resolvable:$true] %s171
      %177 = dma.vmem_to_hbm [thread:$0]  %s170, 256, %s172, [#allocation6], 128, 128, 8
    $region13: #{tpu_custom_call.1} parent=1 // pred_fallthru
      _
    // Predicated region
    $region14: #{tpu_custom_call.1} parent=1 // pred_check
      _
    $region15: #{tpu_custom_call.1} parent=1 // pred_check_branch
      %179 = sbr.rel (0) target = $region17
    $region16: #{tpu_custom_call.1} parent=1 // pred_region
      %181 = vsyncadd [#allocation9], 0
      %s183 = sshll.u32 [#allocation8], 4
      %s184 = int_to_ptr.vmem [resolvable:$true] %s183
      %s185 = sshll.u32 %s3, 4
      %s186 = int_to_ptr.hbm [resolvable:$true] %s185
      %188 = dma.vmem_to_hbm [thread:$0]  %s184, 128, %s186, [#allocation9]
    $region17: #{tpu_custom_call.1} parent=1 // pred_fallthru
      _
    // Predicated region
    $region18: #{tpu_custom_call.1} parent=1 // pred_check
      _
    $region19: #{tpu_custom_call.1} parent=1 // pred_check_branch
      %190 = sbr.rel (0) target = $region21
    $region20: #{tpu_custom_call.1} parent=1 // pred_region
      %192 = dma.done [#allocation6], 256
    $region21: #{tpu_custom_call.1} parent=1 // pred_fallthru
      _
    // Predicated region
    $region22: #{tpu_custom_call.1} parent=1 // pred_check
      _
    $region23: #{tpu_custom_call.1} parent=1 // pred_check_branch
      %194 = sbr.rel (0) target = $region25
    $region24: #{tpu_custom_call.1} parent=1 // pred_region
      %196 = dma.done [#allocation9], 128
    $region25: #{tpu_custom_call.1} parent=1 // pred_fallthru
      _
    %197 = vsyncpa [#allocation5], 1
    %198 = vsyncpa [#allocation6], 1
    %199 = vsyncpa [#allocation9], 1

</llo_original>
